<compile_context>
chip_gen: v7x
topology: tpu7x:2x2x1
jax: 0.10.0
libtpu: 0.0.40
codegen_flags: <defaults>
</compile_context>

<pallas_src>
import jax
import jax.numpy as jnp
from jax.experimental import pallas as pl
from jax.experimental.pallas import tpu as pltpu


def _shifted_softplus(x):
    # SchNet4AIM.nn.activations.shifted_softplus
    return jax.nn.softplus(x) - jnp.log(2.0)


def aimwise_kernel(x_ref, w1_ref, b1_ref, w2_ref, b2_ref, out_ref):
    # x_ref:  (TM, k*n_in)    packed rows (k atoms per lane-row), input dtype
    # w1_ref: (k*n_in, k*h)   block-diagonal Dense1 weights (VMEM-resident)
    # b1_ref: (1, k*h)
    # w2_ref: (k*h, k*n_out)  block-diagonal Dense2 weights with ScaleShift folded in
    # b2_ref: (1, k*n_out)
    # out_ref:(TM, k*n_out)   unmasked per-atom property (mask applied in wrapper)
    x = x_ref[...]

    # Dense 1 + shifted softplus (MXU matmul, f32 accumulate, EUP softplus)
    h = jnp.dot(x, w1_ref[...], preferred_element_type=jnp.float32) + b1_ref[...]
    h = _shifted_softplus(h)

    # Dense 2 (ScaleShift already folded into w2/b2)
    yi = jnp.dot(h, w2_ref[...], preferred_element_type=jnp.float32) + b2_ref[...]

    out_ref[...] = yi.astype(out_ref.dtype)


def init_aimwise_params(key, n_in, n_out=1, n_layers=2, n_neurons=None):
    """Deterministic parameter init matching AIMwise's pyramidal MLP
    (n_layers=2, n_neurons=None -> hidden = n_in // 2). Xavier-uniform weights,
    zero biases (SchNetPack Dense defaults)."""
    assert n_layers == 2 and n_neurons is None
    hidden = n_in // 2
    k1, k2 = jax.random.split(key)

    def xavier(k, fan_in, fan_out):
        lim = jnp.sqrt(6.0 / (fan_in + fan_out))
        return jax.random.uniform(k, (fan_in, fan_out), jnp.float32, -lim, lim)

    w1 = xavier(k1, n_in, hidden)
    b1 = jnp.zeros((1, hidden), jnp.float32)
    w2 = xavier(k2, hidden, n_out)
    b2 = jnp.zeros((1, n_out), jnp.float32)
    return w1, b1, w2, b2


def _padded_block_bytes(rows, cols, dtype):
    """VMEM footprint of one (rows, cols) block after (sublane, 128) tile padding."""
    item = jnp.dtype(dtype).itemsize
    sub = 8 * max(1, 4 // item)          # 8 (f32), 16 (bf16), 32 (int8) sublanes/vreg
    rows_p = -(-rows // sub) * sub
    cols_p = -(-cols // 128) * 128
    return rows_p * cols_p * item


def aimwise_forward(representation, atom_mask, params, mean=0.0, stddev=1.0,
                    tm=8192):
    """AIMwise forward. representation: (B, A, n_in); atom_mask: (B, A).
    Returns per-atom property y of shape (B, A, n_out) in float32."""
    w1, b1, w2, b2 = params
    B, A, n_in = representation.shape
    hidden = w1.shape[1]
    n_out = w2.shape[1]
    N = B * A
    in_dtype = representation.dtype

    # --- fold ScaleShift into Dense2 (tiny, one-time, trace-time transform) ---
    w2_eff = w2.astype(jnp.float32) * jnp.float32(stddev)
    b2_eff = b2.astype(jnp.float32) * jnp.float32(stddev) + jnp.float32(mean)

    # --- lane-dense atom packing: k atoms per 128-lane row when possible ---
    if n_in < 128 and 128 % n_in == 0:
        k = 128 // n_in
    else:
        k = 1
    n_in_p, h_p, n_out_p = k * n_in, k * hidden, k * n_out

    if k > 1:
        eye_k = jnp.eye(k, dtype=jnp.float32)
        w1_p = jnp.kron(eye_k, w1.astype(jnp.float32)).astype(in_dtype)   # (k*n_in, k*h)
        b1_p = jnp.tile(b1.reshape(1, hidden).astype(jnp.float32), (1, k))
        w2_p = jnp.kron(eye_k, w2_eff)                                    # (k*h, k*n_out)
        b2_p = jnp.tile(b2_eff.reshape(1, n_out), (1, k))
    else:
        w1_p = w1.astype(in_dtype)
        b1_p = b1.reshape(1, hidden).astype(jnp.float32)
        w2_p = w2_eff
        b2_p = b2_eff.reshape(1, n_out)

    # --- flatten atoms; pad ONLY to a multiple of k (usually a no-op) ---
    x = representation.reshape(N, n_in)
    N_pad = -(-N // k) * k
    if N_pad != N:
        x = jnp.pad(x, ((0, N_pad - N), (0, 0)))
    n_rows = N_pad // k
    x_p = x.reshape(n_rows, n_in_p)          # free contiguous view, lane-dense

    # --- row tiling: cdiv grid, ragged last block handled by Pallas boundary masking ---
    if n_rows <= tm:
        tm_eff = n_rows                      # single block == full array dims
    else:
        tm_eff = max(16, (tm // 16) * 16)    # 16-aligned (bf16 sublane granule)
    num_steps = -(-n_rows // tm_eff)
    grid = (num_steps,)

    # --- deepen input pipelining on the streamed operand only ---
    x_buffers = 3 if num_steps >= 3 else 2
    x_spec_kwargs = {}
    if x_buffers == 3:
        x_spec_kwargs["pipeline_mode"] = pl.Buffered(3)

    # --- VMEM budget from the actual (padded) block footprints ---
    vmem_bytes = (
        x_buffers * _padded_block_bytes(tm_eff, n_in_p, in_dtype)
        + 2 * _padded_block_bytes(tm_eff, n_out_p, jnp.float32)
        + 2 * (_padded_block_bytes(n_in_p, h_p, w1_p.dtype)
               + _padded_block_bytes(1, h_p, jnp.float32)
               + _padded_block_bytes(h_p, n_out_p, jnp.float32)
               + _padded_block_bytes(1, n_out_p, jnp.float32)))
    vmem_limit = int(min(max(int(vmem_bytes * 1.25) + (4 << 20), 32 << 20), 96 << 20))

    out = pl.pallas_call(
        aimwise_kernel,
        out_shape=jax.ShapeDtypeStruct((n_rows, n_out_p), jnp.float32),
        grid=grid,
        in_specs=[
            pl.BlockSpec((tm_eff, n_in_p), lambda i: (i, 0), **x_spec_kwargs),  # x (streamed)
            pl.BlockSpec((n_in_p, h_p), lambda i: (0, 0)),    # w1 (resident)
            pl.BlockSpec((1, h_p), lambda i: (0, 0)),         # b1 (resident)
            pl.BlockSpec((h_p, n_out_p), lambda i: (0, 0)),   # w2 (resident)
            pl.BlockSpec((1, n_out_p), lambda i: (0, 0)),     # b2 (resident)
        ],
        out_specs=pl.BlockSpec((tm_eff, n_out_p), lambda i: (i, 0)),
        compiler_params=pltpu.CompilerParams(
            dimension_semantics=("parallel",),
            vmem_limit_bytes=vmem_limit),
    )(x_p, w1_p, b1_p, w2_p, b2_p)

    # DummyAggregate('atomic'): per-atom output, padded atoms zeroed by atom_mask.
    # Applied here on the tiny (N, n_out) output, fused with the unpack/slice.
    y = out.reshape(N_pad, n_out)[:N]
    y = y * atom_mask.reshape(N, 1).astype(y.dtype)
    return y.reshape(B, A, n_out)


def aimwise_reference(representation, atom_mask, params, mean=0.0, stddev=1.0):
    w1, b1, w2, b2 = params
    h = _shifted_softplus(representation.astype(jnp.float32) @ w1 + b1)
    yi = h @ w2 + b2
    yi = yi * stddev + mean
    return yi * atom_mask[..., None]


if __name__ == "__main__":
    key = jax.random.PRNGKey(0)
    kx1, km1, kx2, kp = jax.random.split(key, 4)

    n_in, n_out = 32, 1
    params = init_aimwise_params(kp, n_in, n_out)
    mean, stddev = -0.25, 1.7      # nontrivial ScaleShift to exercise the fold

    # --- Test 1: small shapes, single-block path ---
    B1, A1 = 2, 8
    rep1 = jax.random.normal(kx1, (B1, A1, n_in), jnp.float32)
    mask1 = jnp.ones((B1, A1), jnp.float32).at[1, -2:].set(0.0)   # padded atoms
    y1 = jax.block_until_ready(aimwise_forward(rep1, mask1, params, mean, stddev))
    y1_ref = aimwise_reference(rep1, mask1, params, mean, stddev)
    assert y1.shape == (B1, A1, n_out)
    assert jnp.allclose(y1, y1_ref, atol=1e-5, rtol=1e-4)

    # --- Test 2: multi-step ragged grid (forced small tile), pad-to-k path,
    #     Buffered(3) input pipelining ---
    B2, A2 = 2, 65                 # N=130 -> pad to 132 atoms, 33 packed rows
    rep2 = jax.random.normal(kx2, (B2, A2, n_in), jnp.float32)
    mask2 = jnp.ones((B2, A2), jnp.float32).at[1, -3:].set(0.0)
    y2 = jax.block_until_ready(aimwise_forward(rep2, mask2, params, mean, stddev, tm=16))
    y2_ref = aimwise_reference(rep2, mask2, params, mean, stddev)
    assert y2.shape == (B2, A2, n_out)
    assert jnp.allclose(y2, y2_ref, atol=1e-5, rtol=1e-4)

    print("KERNEL_OK")
</pallas_src>

<mosaic_0001>
module attributes {stable_mosaic.version = 11 : i64} {
  func.func @aimwise_kernel(%arg0: i32, %arg1: memref<4x128xf32, #tpu.memory_space<vmem>>, %arg2: memref<128x64xf32, #tpu.memory_space<vmem>>, %arg3: memref<1x64xf32, #tpu.memory_space<vmem>>, %arg4: memref<64x4xf32, #tpu.memory_space<vmem>>, %arg5: memref<1x4xf32, #tpu.memory_space<vmem>>, %arg6: memref<4x4xf32, #tpu.memory_space<vmem>>) attributes {dimension_semantics = [#tpu.dimension_semantics<parallel>], iteration_bounds = array<i64: 1>, scalar_prefetch = 0 : i64, scratch_operands = 0 : i64, tpu.core_type = #tpu.core_type<tc>, window_params = [{transform_indices = @transform_0, window_bounds = array<i64: 4, 128>}, {pipeline_mode = #tpu.pipeline_mode<synchronous>, transform_indices = @transform_1, window_bounds = array<i64: 128, 64>}, {pipeline_mode = #tpu.pipeline_mode<synchronous>, transform_indices = @transform_2, window_bounds = array<i64: 1, 64>}, {pipeline_mode = #tpu.pipeline_mode<synchronous>, transform_indices = @transform_3, window_bounds = array<i64: 64, 4>}, {pipeline_mode = #tpu.pipeline_mode<synchronous>, transform_indices = @transform_4, window_bounds = array<i64: 1, 4>}, {transform_indices = @transform_5, window_bounds = array<i64: 4, 4>}]} {
    %c0 = arith.constant 0 : index
    %c0_0 = arith.constant 0 : index
    %0 = vector.load %arg1[%c0, %c0_0] : memref<4x128xf32, #tpu.memory_space<vmem>>, vector<4x128xf32>
    %c0_1 = arith.constant 0 : index
    %c0_2 = arith.constant 0 : index
    %1 = vector.load %arg2[%c0_1, %c0_2] : memref<128x64xf32, #tpu.memory_space<vmem>>, vector<128x64xf32>
    %cst = arith.constant dense<0.000000e+00> : vector<4x64xf32>
    %2 = tpu.matmul %0, %1, %cst {dimension_numbers = #tpu.dot_dimension_numbers<[1], [0], [0], [1], [0, 0, 1, 1], [], []>} : vector<4x128xf32>, vector<128x64xf32>, vector<4x64xf32> -> vector<4x64xf32>
    %c0_3 = arith.constant 0 : index
    %c0_4 = arith.constant 0 : index
    %3 = vector.load %arg3[%c0_3, %c0_4] : memref<1x64xf32, #tpu.memory_space<vmem>>, vector<1x64xf32>
    %4 = vector.broadcast %3 : vector<1x64xf32> to vector<4x64xf32>
    %5 = arith.addf %2, %4 : vector<4x64xf32>
    %cst_5 = arith.constant 0.000000e+00 : f32
    %6 = vector.broadcast %cst_5 : f32 to vector<4x64xf32>
    %7 = arith.maximumf %5, %6 : vector<4x64xf32>
    %8 = vector.broadcast %cst_5 : f32 to vector<4x64xf32>
    %9 = arith.subf %5, %8 : vector<4x64xf32>
    %10 = arith.cmpf one, %9, %9 : vector<4x64xf32>
    %11 = vector.broadcast %cst_5 : f32 to vector<4x64xf32>
    %12 = arith.addf %5, %11 : vector<4x64xf32>
    %13 = math.absf %9 : vector<4x64xf32>
    %cst_6 = arith.constant 0.000000e+00 : f32
    %14 = vector.broadcast %cst_6 : f32 to vector<4x64xf32>
    %15 = arith.subf %14, %13 : vector<4x64xf32>
    %16 = math.exp %15 : vector<4x64xf32>
    %17 = math.log1p %16 : vector<4x64xf32>
    %18 = arith.addf %7, %17 : vector<4x64xf32>
    %19 = arith.select %10, %12, %18 : vector<4x64xi1>, vector<4x64xf32>
    %cst_7 = arith.constant 2.000000e+00 : f32
    %20 = math.log %cst_7 : f32
    %21 = vector.broadcast %20 : f32 to vector<4x64xf32>
    %22 = arith.subf %19, %21 : vector<4x64xf32>
    %c0_8 = arith.constant 0 : index
    %c0_9 = arith.constant 0 : index
    %23 = vector.load %arg4[%c0_8, %c0_9] : memref<64x4xf32, #tpu.memory_space<vmem>>, vector<64x4xf32>
    %cst_10 = arith.constant dense<0.000000e+00> : vector<4x4xf32>
    %24 = tpu.matmul %22, %23, %cst_10 {dimension_numbers = #tpu.dot_dimension_numbers<[1], [0], [0], [1], [0, 0, 1, 1], [], []>} : vector<4x64xf32>, vector<64x4xf32>, vector<4x4xf32> -> vector<4x4xf32>
    %c0_11 = arith.constant 0 : index
    %c0_12 = arith.constant 0 : index
    %25 = vector.load %arg5[%c0_11, %c0_12] : memref<1x4xf32, #tpu.memory_space<vmem>>, vector<1x4xf32>
    %26 = vector.broadcast %25 : vector<1x4xf32> to vector<4x4xf32>
    %27 = arith.addf %24, %26 : vector<4x4xf32>
    %c0_13 = arith.constant 0 : index
    %c0_14 = arith.constant 0 : index
    %28 = vector.load %arg6[%c0_13, %c0_14] : memref<4x4xf32, #tpu.memory_space<vmem>>, vector<4x4xf32>
    tpu.vector_store %arg6[%c0_13, %c0_14], %27 {strides = array<i32>} : memref<4x4xf32, #tpu.memory_space<vmem>>, vector<4x4xf32>,
    return
  }
  func.func @transform_0(%arg0: i32) -> (i32, i32) {
    %c0_i32 = arith.constant 0 : i32
    %c0_i32_0 = arith.constant 0 : i32
    return %arg0, %c0_i32 : i32, i32
  }
  func.func @transform_1(%arg0: i32) -> (i32, i32) {
    %c0_i32 = arith.constant 0 : i32
    %c0_i32_0 = arith.constant 0 : i32
    %c0_i32_1 = arith.constant 0 : i32
    return %c0_i32, %c0_i32_0 : i32, i32
  }
  func.func @transform_2(%arg0: i32) -> (i32, i32) {
    %c0_i32 = arith.constant 0 : i32
    %c0_i32_0 = arith.constant 0 : i32
    %c0_i32_1 = arith.constant 0 : i32
    return %c0_i32, %c0_i32_0 : i32, i32
  }
  func.func @transform_3(%arg0: i32) -> (i32, i32) {
    %c0_i32 = arith.constant 0 : i32
    %c0_i32_0 = arith.constant 0 : i32
    %c0_i32_1 = arith.constant 0 : i32
    return %c0_i32, %c0_i32_0 : i32, i32
  }
  func.func @transform_4(%arg0: i32) -> (i32, i32) {
    %c0_i32 = arith.constant 0 : i32
    %c0_i32_0 = arith.constant 0 : i32
    %c0_i32_1 = arith.constant 0 : i32
    return %c0_i32, %c0_i32_0 : i32, i32
  }
  func.func @transform_5(%arg0: i32) -> (i32, i32) {
    %c0_i32 = arith.constant 0 : i32
    %c0_i32_0 = arith.constant 0 : i32
    return %arg0, %c0_i32 : i32, i32
  }
}

</mosaic_0001>

<llo_original>
// kernel: tpu_custom_call.1
$region0: #{tpu_custom_call.1}
  #allocation0 [shape = 'u32[]', space=smem, size = 0x4, offset = 0x4, fixed_abs, tag = 'smem constant byte address 0x4 - core index']
  #allocation1 [shape = 'u32[144,128]{1,0:T(1,128)}', space=vmem, size = 0x12000, scoped, tag = 'internal scratch']
  %s0 = inlined_call_operand.vmem [shape: f32[4,128], index: 0, kind: input, shape index: {}]
  %s1 = inlined_call_operand.vmem [shape: f32[128,64], index: 1, kind: input, shape index: {}]
  %s2 = inlined_call_operand.vmem [shape: f32[1,64], index: 2, kind: input, shape index: {}]
  %s3 = inlined_call_operand.vmem [shape: f32[64,4], index: 3, kind: input, shape index: {}]
  %s4 = inlined_call_operand.vmem [shape: f32[1,4], index: 4, kind: input, shape index: {}]
  %s5 = inlined_call_operand.hbm [shape: f32[4,4], index: 5, kind: output, shape index: {}]
  %s6 = sld [smem:[#allocation0]]
  $region30: #{tpu_custom_call.1} parent=0
    _
  %s8 = ssub.s32 1, %s6
  %s9 = scalar_select 0, %s8, %s6
  $region1: #{tpu_custom_call.1} parent=0
    #allocation2 [shape = 'u8[2048]{0}', space=vmem, size = 0x800, scoped, tag = 'output window, operand 0, single buffered']
    #allocation3 [shape = 's32[1]{0}', space=sflag, size = 0x4, scoped, tag = 'scoped memory for tpu_custom_call.1']
    %10 = vsyncpa [#allocation3], 0
    // Predicated region
    $region2: #{tpu_custom_call.1} parent=1 // pred_check
      _
    $region3: #{tpu_custom_call.1} parent=1 // pred_check_branch
      %12 = sbr.rel (0) target = $region5
    $region4: #{tpu_custom_call.1} parent=1 // pred_region
      _
    $region5: #{tpu_custom_call.1} parent=1 // pred_fallthru
      _
    // Predicated region
    $region6: #{tpu_custom_call.1} parent=1 // pred_check
      _
    $region7: #{tpu_custom_call.1} parent=1 // pred_check_branch
      %14 = sbr.rel (0) target = $region9
    $region8: #{tpu_custom_call.1} parent=1 // pred_region
      _
    $region9: #{tpu_custom_call.1} parent=1 // pred_fallthru
      _
    // Predicated region
    $region10: #{tpu_custom_call.1} parent=1 // pred_check
      _
    $region11: #{tpu_custom_call.1} parent=1 // pred_check_branch
      %16 = sbr.rel (0) target = $region13
    $region12: #{tpu_custom_call.1} parent=1 // pred_region
      _
    $region13: #{tpu_custom_call.1} parent=1 // pred_fallthru
      _
    // Predicated region
    $region14: #{tpu_custom_call.1} parent=1 // pred_check
      _
    $region15: #{tpu_custom_call.1} parent=1 // pred_check_branch
      %18 = sbr.rel (0) target = $region17
    $region16: #{tpu_custom_call.1} parent=1 // pred_region
      _
    $region17: #{tpu_custom_call.1} parent=1 // pred_fallthru
      _
    // Predicated region
    $region18: #{tpu_custom_call.1} parent=1 // pred_check
      _
    $region19: #{tpu_custom_call.1} parent=1 // pred_check_branch
      %20 = sbr.rel (0) target = $region21
    $region20: #{tpu_custom_call.1} parent=1 // pred_region
      _
    $region21: #{tpu_custom_call.1} parent=1 // pred_fallthru
      _
    %v21 = vld [vmem:[%s0] sm:$0xf]
    %v22 = vld [vmem:[%s1] sm:$0xff]
    %v23 = vld [vmem:[%s1 + $0x8] sm:$0xff]
    %v24 = vld [vmem:[%s1 + $0x10] sm:$0xff]
    %v25 = vld [vmem:[%s1 + $0x18] sm:$0xff]
    %v26 = vld [vmem:[%s1 + $0x20] sm:$0xff]
    %v27 = vld [vmem:[%s1 + $0x28] sm:$0xff]
    %v28 = vld [vmem:[%s1 + $0x30] sm:$0xff]
    %v29 = vld [vmem:[%s1 + $0x38] sm:$0xff]
    %v30 = vld [vmem:[%s1 + $0x40] sm:$0xff]
    %v31 = vld [vmem:[%s1 + $0x48] sm:$0xff]
    %v32 = vld [vmem:[%s1 + $0x50] sm:$0xff]
    %v33 = vld [vmem:[%s1 + $0x58] sm:$0xff]
    %v34 = vld [vmem:[%s1 + $0x60] sm:$0xff]
    %v35 = vld [vmem:[%s1 + $0x68] sm:$0xff]
    %v36 = vld [vmem:[%s1 + $0x70] sm:$0xff]
    %v37 = vld [vmem:[%s1 + $0x78] sm:$0xff]
    %v38 = vld [vmem:[%s2] sm:$0x1]
    %v40 = vlaneseq
    %v41 = vshrl.u32 %v40, 7
    %v42 = vsub.s32 0, %v41
    %v43 = vrot.slane %v38, %v42
    %45 = vmatprep.subr.mxu0 0.0
    %46 = vmatpush1.msra.mxu0 %v22
    %47 = vmatprep.subr.mxu0 0.0
    %48 = vmatpush1.msra.mxu0 %v23
    %49 = vmatprep.subr.mxu0 0.0
    %50 = vmatpush1.msra.mxu0 %v24
    %51 = vmatprep.subr.mxu0 0.0
    %52 = vmatpush1.msra.mxu0 %v25
    %53 = vmatprep.subr.mxu0 0.0
    %54 = vmatpush1.msra.mxu0 %v26
    %55 = vmatprep.subr.mxu0 0.0
    %56 = vmatpush1.msra.mxu0 %v27
    %57 = vmatprep.subr.mxu0 0.0
    %58 = vmatpush1.msra.mxu0 %v28
    %59 = vmatprep.subr.mxu0 0.0
    %60 = vmatpush1.msra.mxu0 %v29
    %61 = vmatprep.subr.mxu0 0.0
    %62 = vmatpush1.msra.mxu0 %v30
    %63 = vmatprep.subr.mxu0 0.0
    %64 = vmatpush1.msra.mxu0 %v31
    %65 = vmatprep.subr.mxu0 0.0
    %66 = vmatpush1.msra.mxu0 %v32
    %67 = vmatprep.subr.mxu0 0.0
    %68 = vmatpush1.msra.mxu0 %v33
    %69 = vmatprep.subr.mxu0 0.0
    %70 = vmatpush1.msra.mxu0 %v34
    %71 = vmatprep.subr.mxu0 0.0
    %72 = vmatpush1.msra.mxu0 %v35
    %73 = vmatprep.subr.mxu0 0.0
    %74 = vmatpush1.msra.mxu0 %v36
    %75 = vmatprep.subr.mxu0 0.0
    %76 = vmatpush1.msra.mxu0 %v37
    %77 = vmatprep.subr.mxu0 0.0
    %78 = vmatpush1.msra.mxu0 0.0
    %79 = vmatprep.subr.mxu0 0.0
    %80 = vmatpush1.msra.mxu0 0.0
    %81 = vmatprep.subr.mxu0 0.0
    %82 = vmatpush1.msra.mxu0 0.0
    %83 = vmatprep.subr.mxu0 0.0
    %84 = vmatpush1.msra.mxu0 0.0
    %85 = vmatprep.subr.mxu0 0.0
    %86 = vmatpush1.msra.mxu0 0.0
    %87 = vmatprep.subr.mxu0 0.0
    %88 = vmatpush1.msra.mxu0 0.0
    %89 = vmatprep.subr.mxu0 0.0
    %90 = vmatpush1.msra.mxu0 0.0
    %91 = vmatprep.subr.mxu0 0.0
    %92 = vmatpush1.msra.mxu0 0.0
    %93 = vmatprep.subr.mxu0 0.0
    %94 = vmatpush1.msra.mxu0 0.0
    %95 = vmatprep.subr.mxu0 0.0
    %96 = vmatpush1.msra.mxu0 0.0
    %97 = vmatprep.subr.mxu0 0.0
    %98 = vmatpush1.msra.mxu0 0.0
    %99 = vmatprep.subr.mxu0 0.0
    %100 = vmatpush1.msra.mxu0 0.0
    %101 = vmatprep.subr.mxu0 0.0
    %102 = vmatpush1.msra.mxu0 0.0
    %103 = vmatprep.subr.mxu0 0.0
    %104 = vmatpush1.msra.mxu0 0.0
    %105 = vmatprep.subr.mxu0 0.0
    %106 = vmatpush1.msra.mxu0 0.0
    %107 = vmatprep.subr.mxu0 0.0
    %108 = vmatpush1.msra.mxu0 0.0
    %109 = vmatprep.mubr.f32.mxu0 0.0
    %110 = vmatmul.mubr.f32.gmra.mrb[0].mxu0 %v21
    %v111 = vpop.f32.mrb[0].mxu0
    %v112 = vadd.f32 %v43, %v111
    %v113 = vpop.f32.mrb[0].mxu0
    %114 = vdwg.mxu0
    %v115 = vmax.f32 %v112, 0.0
    %vm116 = vcmp.ne.f32.partialorder %v112, %v112
    %v117 = vadd.f32 %v112, 0.0
    %v118 = vand.u32 2147483647, %v112
    %v119 = vsub.f32 0.0, %v118
    %v120 = vmul.f32 %v119, 1.442695
    %v121 = vpow.pop %v120
    %v122 = vadd.f32 %v121, 1.0
    %v123 = vlog2.pop %v122
    %v124 = vmul.f32 %v123, 0.6931472
    %v125 = vmul.f32 -0.5, %v121
    %v126 = vadd.f32 %v125, 1.0
    %v127 = vmul.f32 %v126, %v121
    %v128 = vand.u32 2147483647, %v121
    %vm129 = vcmp.lt.f32.partialorder %v128, 0.0004427343
    %v130 = vsel %vm129, %v127, %v124
    %v131 = vadd.f32 %v115, %v130
    %v132 = vsel %vm116, %v117, %v131
    %v133 = vsub.f32 %v132, 0.6931472
    %v134 = vld [vmem:[%s3] sm:$0xff]
    %v135 = vld [vmem:[%s3 + $0x8] sm:$0xff]
    %v136 = vld [vmem:[%s3 + $0x10] sm:$0xff]
    %v137 = vld [vmem:[%s3 + $0x18] sm:$0xff]
    %v138 = vld [vmem:[%s3 + $0x20] sm:$0xff]
    %v139 = vld [vmem:[%s3 + $0x28] sm:$0xff]
    %v140 = vld [vmem:[%s3 + $0x30] sm:$0xff]
    %v141 = vld [vmem:[%s3 + $0x38] sm:$0xff]
    %v142 = vld [vmem:[%s4] sm:$0x1]
    %v144 = vlaneseq
    %v145 = vshrl.u32 %v144, 7
    %v146 = vsub.s32 0, %v145
    %v147 = vrot.slane %v142, %v146
    %vm149 = vcmask 523264
    %v151 = vsel %vm149, %v133, 0
    %153 = vmatprep.subr.mxu0 0.0
    %154 = vmatpush1.msra.mxu0 %v134
    %155 = vmatprep.subr.mxu0 0.0
    %156 = vmatpush1.msra.mxu0 %v135
    %157 = vmatprep.subr.mxu0 0.0
    %158 = vmatpush1.msra.mxu0 %v136
    %159 = vmatprep.subr.mxu0 0.0
    %160 = vmatpush1.msra.mxu0 %v137
    %161 = vmatprep.subr.mxu0 0.0
    %162 = vmatpush1.msra.mxu0 %v138
    %163 = vmatprep.subr.mxu0 0.0
    %164 = vmatpush1.msra.mxu0 %v139
    %165 = vmatprep.subr.mxu0 0.0
    %166 = vmatpush1.msra.mxu0 %v140
    %167 = vmatprep.subr.mxu0 0.0
    %168 = vmatpush1.msra.mxu0 %v141
    %169 = vmatprep.subr.mxu0 0.0
    %170 = vmatpush1.msra.mxu0 0.0
    %171 = vmatprep.subr.mxu0 0.0
    %172 = vmatpush1.msra.mxu0 0.0
    %173 = vmatprep.subr.mxu0 0.0
    %174 = vmatpush1.msra.mxu0 0.0
    %175 = vmatprep.subr.mxu0 0.0
    %176 = vmatpush1.msra.mxu0 0.0
    %177 = vmatprep.subr.mxu0 0.0
    %178 = vmatpush1.msra.mxu0 0.0
    %179 = vmatprep.subr.mxu0 0.0
    %180 = vmatpush1.msra.mxu0 0.0
    %181 = vmatprep.subr.mxu0 0.0
    %182 = vmatpush1.msra.mxu0 0.0
    %183 = vmatprep.subr.mxu0 0.0
    %184 = vmatpush1.msra.mxu0 0.0
    %185 = vmatprep.subr.mxu0 0.0
    %186 = vmatpush1.msra.mxu0 0.0
    %187 = vmatprep.subr.mxu0 0.0
    %188 = vmatpush1.msra.mxu0 0.0
    %189 = vmatprep.subr.mxu0 0.0
    %190 = vmatpush1.msra.mxu0 0.0
    %191 = vmatprep.subr.mxu0 0.0
    %192 = vmatpush1.msra.mxu0 0.0
    %193 = vmatprep.subr.mxu0 0.0
    %194 = vmatpush1.msra.mxu0 0.0
    %195 = vmatprep.subr.mxu0 0.0
    %196 = vmatpush1.msra.mxu0 0.0
    %197 = vmatprep.subr.mxu0 0.0
    %198 = vmatpush1.msra.mxu0 0.0
    %199 = vmatprep.subr.mxu0 0.0
    %200 = vmatpush1.msra.mxu0 0.0
    %201 = vmatprep.subr.mxu0 0.0
    %202 = vmatpush1.msra.mxu0 0.0
    %203 = vmatprep.subr.mxu0 0.0
    %204 = vmatpush1.msra.mxu0 0.0
    %205 = vmatprep.subr.mxu0 0.0
    %206 = vmatpush1.msra.mxu0 0.0
    %207 = vmatprep.subr.mxu0 0.0
    %208 = vmatpush1.msra.mxu0 0.0
    %209 = vmatprep.subr.mxu0 0.0
    %210 = vmatpush1.msra.mxu0 0.0
    %211 = vmatprep.subr.mxu0 0.0
    %212 = vmatpush1.msra.mxu0 0.0
    %213 = vmatprep.subr.mxu0 0.0
    %214 = vmatpush1.msra.mxu0 0.0
    %215 = vmatprep.subr.mxu0 0.0
    %216 = vmatpush1.msra.mxu0 0.0
    %217 = vmatprep.mubr.f32.mxu0 0.0
    %218 = vmatmul.mubr.f32.gmra.mrb[0].mxu0 %v151
    %v219 = vpop.f32.mrb[0].mxu0
    %v220 = vadd.f32 %v147, %v219
    %v221 = vpop.f32.mrb[0].mxu0
    %222 = vdwg.mxu0
    %vm223 = vcmask 27648
    %224 = vst.msk [vmem:[#allocation2] sm:$0xf] %vm223, %v220
    // Predicated region
    $region22: #{tpu_custom_call.1} parent=1 // pred_check
      _
    $region23: #{tpu_custom_call.1} parent=1 // pred_check_branch
      %226 = sbr.rel (0) target = $region25
    $region24: #{tpu_custom_call.1} parent=1 // pred_region
      %s228 = ssub.s32 64, 64
      %229 = vsyncadd [#allocation3], %s228
      %s231 = sshll.u32 [#allocation2], 4
      %s232 = int_to_ptr.vmem [resolvable:$true] %s231
      %234 = dma.vmem_to_hbm [thread:$0]  %s232, 64, %s5, [#allocation3]
    $region25: #{tpu_custom_call.1} parent=1 // pred_fallthru
      _
    // Predicated region
    $region26: #{tpu_custom_call.1} parent=1 // pred_check
      _
    $region27: #{tpu_custom_call.1} parent=1 // pred_check_branch
      %236 = sbr.rel (0) target = $region29
    $region28: #{tpu_custom_call.1} parent=1 // pred_region
      %237 = dma.done [#allocation3], 64
    $region29: #{tpu_custom_call.1} parent=1 // pred_fallthru
      _
    %238 = vsyncpa [#allocation3], 1

</llo_original>
